<compile_context>
chip_gen: v5e
topology: v5e:2x2
jax: 0.10.0
libtpu: 0.0.40
codegen_flags: <defaults>
</compile_context>

<pallas_src>
import jax
import jax.numpy as jnp
from jax.experimental import pallas as pl
from jax.experimental.pallas import tpu as pltpu


def _make_gem_kernel(p, eps, hw, lane_chunks):
    p = float(p)
    eps = float(eps)
    inv_hw = 1.0 / float(hw)

    def _pow_static(v, q):
        # q is a static Python float.
        if q == 1.0:
            return v                      # p == 1 fast path: no pow at all
        if q == float(int(q)) and 2 <= int(q) <= 4:
            out = v                       # small integer power -> VPU multiplies
            for _ in range(int(q) - 1):
                out = out * v
            return out
        return v ** q                     # general case: float pow (EUP)

    def kernel(x_ref, o_ref):
        # x_ref: (TILE_R, HW) block in VMEM (native dtype)
        # o_ref: (TILE_R, 1) block in VMEM
        x = x_ref[...].astype(jnp.float32)
        x = jnp.maximum(x, eps)           # clamp(min=eps)
        x = _pow_static(x, p)             # pow(p)

        if lane_chunks > 1:
            # Hierarchical reduce: lane-aligned 128-wide chunks summed on the
            # VPU, then a single cross-lane reduce on the XLU.
            acc = x[:, 0:128]
            for k in range(1, lane_chunks):
                acc = acc + x[:, k * 128:(k + 1) * 128]
            s = jnp.sum(acc, axis=-1, keepdims=True)
        else:
            s = jnp.sum(x, axis=-1, keepdims=True)

        m = s * inv_hw                    # avg_pool2d over the full (H, W)
        if p != 1.0:
            m = m ** (1.0 / p)            # pow(1/p) only when it matters
        o_ref[...] = m.astype(o_ref.dtype)

    return kernel


def gem_pallas(x, p=1, eps=1e-06):
    """x: (N, C, H, W) -> (N, C, 1, 1), matching GeM.forward (p=1, eps=1e-6)."""
    n, c, h, w = x.shape
    nc = n * c
    hw = h * w
    itemsize = jnp.dtype(x.dtype).itemsize

    x2d = x.reshape(nc, hw)               # no dtype upcast: DMA the native dtype

    # --- tile sizing: ~<=2 MiB per input buffer (2x for double buffering is
    #     still well under the default scoped-VMEM limit on v5e/v6e/v7x),
    #     TILE_R a multiple of 8, never larger than the (row-padded) problem.
    hw_lanes = ((hw + 127) // 128) * 128  # lane padding inside VMEM
    target_tile_bytes = 2 * 1024 * 1024
    tile_r = (target_tile_bytes // (hw_lanes * itemsize)) // 8 * 8
    tile_r = int(max(8, min(tile_r, 1024)))
    nc_r8 = ((nc + 7) // 8) * 8
    tile_r = int(min(tile_r, nc_r8))

    nc_pad = ((nc + tile_r - 1) // tile_r) * tile_r
    if nc_pad != nc:
        x2d = jnp.pad(x2d, ((0, nc_pad - nc), (0, 0)))

    # Hierarchical lane reduction only when HW splits cleanly into 128-chunks.
    n_chunks = hw // 128
    lane_chunks = n_chunks if (hw % 128 == 0 and 2 <= n_chunks <= 32) else 1

    grid = (nc_pad // tile_r,)
    kernel = _make_gem_kernel(p, eps, hw, lane_chunks)

    out2d = pl.pallas_call(
        kernel,
        out_shape=jax.ShapeDtypeStruct((nc_pad, 1), x.dtype),
        grid_spec=pltpu.PrefetchScalarGridSpec(
            num_scalar_prefetch=0,
            grid=grid,
            in_specs=[pl.BlockSpec((tile_r, hw), lambda i: (i, 0))],
            out_specs=pl.BlockSpec((tile_r, 1), lambda i: (i, 0)),
        ),
        compiler_params=pltpu.CompilerParams(
            dimension_semantics=("parallel",),
        ),
        cost_estimate=pl.CostEstimate(
            flops=nc * hw,
            transcendentals=0 if float(p) == 1.0 else 2 * nc * hw,
            bytes_accessed=nc * hw * itemsize + nc * itemsize,
        ),
    )(x2d)

    return out2d[:nc].reshape(n, c, 1, 1)


if __name__ == "__main__":
    key = jax.random.PRNGKey(0)
    eps = 1e-06

    # --- case 1: the module's effective config (p = 1), HW multiple of 128.
    x1 = jax.random.normal(key, (2, 4, 16, 16), dtype=jnp.float32)
    out1 = jax.block_until_ready(gem_pallas(x1, p=1, eps=eps))
    ref1 = jnp.mean(jnp.maximum(x1, eps), axis=(-2, -1), keepdims=True)
    assert out1.shape == (2, 4, 1, 1)
    assert jnp.allclose(out1, ref1, atol=1e-6, rtol=1e-6)

    # --- case 2: exercise row padding (nc=6), odd HW (49), and the p=3 path.
    x2 = jax.random.normal(jax.random.PRNGKey(1), (2, 3, 7, 7), dtype=jnp.float32)
    out2 = jax.block_until_ready(gem_pallas(x2, p=3, eps=eps))
    ref2 = jnp.mean(jnp.maximum(x2, eps) ** 3, axis=(-2, -1), keepdims=True) ** (1.0 / 3.0)
    assert out2.shape == (2, 3, 1, 1)
    assert jnp.allclose(out2, ref2, atol=1e-5, rtol=1e-5)

    print("KERNEL_OK")
</pallas_src>

<mosaic_0001>
module attributes {stable_mosaic.version = 11 : i64} {
  func.func @kernel(%arg0: i32, %arg1: memref<8x256xf32, #tpu.memory_space<vmem>>, %arg2: memref<8x1xf32, #tpu.memory_space<vmem>>) attributes {dimension_semantics = [#tpu.dimension_semantics<parallel>], iteration_bounds = array<i64: 1>, scalar_prefetch = 0 : i64, scratch_operands = 0 : i64, tpu.core_type = #tpu.core_type<tc>, window_params = [{transform_indices = @transform_0, window_bounds = array<i64: 8, 256>}, {transform_indices = @transform_1, window_bounds = array<i64: 8, 1>}]} {
    %c0 = arith.constant 0 : index
    %c0_0 = arith.constant 0 : index
    %0 = vector.load %arg1[%c0, %c0_0] : memref<8x256xf32, #tpu.memory_space<vmem>>, vector<8x256xf32>
    %cst = arith.constant 9.99999997E-7 : f32
    %1 = vector.broadcast %cst : f32 to vector<8x256xf32>
    %2 = arith.maximumf %0, %1 : vector<8x256xf32>
    %3 = vector.extract_strided_slice %2 {offsets = [0, 0], sizes = [8, 128], strides = [1, 1]} : vector<8x256xf32> to vector<8x128xf32>
    %4 = vector.extract_strided_slice %2 {offsets = [0, 128], sizes = [8, 128], strides = [1, 1]} : vector<8x256xf32> to vector<8x128xf32>
    %5 = arith.addf %3, %4 : vector<8x128xf32>
    %cst_1 = arith.constant dense<0.000000e+00> : vector<8xf32>
    %6 = vector.multi_reduction <add>, %5, %cst_1 [1] : vector<8x128xf32> to vector<8xf32>
    %7 = vector.shape_cast %6 : vector<8xf32> to vector<8x1xf32>
    %cst_2 = arith.constant 3.906250e-03 : f32
    %8 = vector.broadcast %cst_2 : f32 to vector<8x1xf32>
    %9 = arith.mulf %7, %8 : vector<8x1xf32>
    %c0_3 = arith.constant 0 : index
    %c0_4 = arith.constant 0 : index
    %10 = vector.load %arg2[%c0_3, %c0_4] : memref<8x1xf32, #tpu.memory_space<vmem>>, vector<8x1xf32>
    tpu.vector_store %arg2[%c0_3, %c0_4], %9 {strides = array<i32>} : memref<8x1xf32, #tpu.memory_space<vmem>>, vector<8x1xf32>,
    return
  }
  func.func @transform_0(%arg0: i32) -> (i32, i32) {
    %c0_i32 = arith.constant 0 : i32
    %c0_i32_0 = arith.constant 0 : i32
    return %arg0, %c0_i32 : i32, i32
  }
  func.func @transform_1(%arg0: i32) -> (i32, i32) {
    %c0_i32 = arith.constant 0 : i32
    %c0_i32_0 = arith.constant 0 : i32
    return %arg0, %c0_i32 : i32, i32
  }
}

</mosaic_0001>

<llo_original>
// kernel: tpu_custom_call.1
$region0: #{tpu_custom_call.1}
  #allocation0 [shape = 'u32[]', space=smem, size = 0x4, offset = 0x4, fixed_abs, tag = 'smem constant byte address 0x4 - core index']
  #allocation1 [shape = 'u32[72,128]{1,0:T(1,128)}', space=vmem, size = 0x9000, scoped, tag = 'internal scratch']
  %s0 = inlined_call_operand.hbm [shape: f32[8,256], index: 0, kind: input, shape index: {}]
  %s1 = inlined_call_operand.vmem [shape: f32[8,1], index: 1, kind: output, shape index: {}]
  %s2 = sld [smem:[#allocation0]]
  $region18: #{tpu_custom_call.1} parent=0
    _
  %s4 = ssub.s32 1, %s2
  %s5 = scalar_select 0, %s4, %s2
  $region1: #{tpu_custom_call.1} parent=0
    #allocation2 [shape = 'u8[8192]{0}', space=vmem, size = 0x2000, scoped, tag = 'input window, operand 0, single buffered']
    #allocation3 [shape = 's32[1]{0}', space=sflag, size = 0x4, scoped, tag = 'scoped memory for tpu_custom_call.1']
    %6 = vsyncpa [#allocation3], 0
    // Predicated region
    $region2: #{tpu_custom_call.1} parent=1 // pred_check
      _
    $region3: #{tpu_custom_call.1} parent=1 // pred_check_branch
      %8 = sbr.rel (0) target = $region5
    $region4: #{tpu_custom_call.1} parent=1 // pred_region
      %10 = vsyncadd [#allocation3], 0
      %s12 = sshll.u32 %s0, 4
      %s13 = int_to_ptr.hbm [resolvable:$true] %s12
      %s14 = sshll.u32 [#allocation2], 4
      %s15 = int_to_ptr.vmem [resolvable:$true] %s14
      %17 = dma.hbm_to_vmem [thread:$0]  %s13, 256, %s15, [#allocation3]
    $region5: #{tpu_custom_call.1} parent=1 // pred_fallthru
      _
    // Predicated region
    $region6: #{tpu_custom_call.1} parent=1 // pred_check
      _
    $region7: #{tpu_custom_call.1} parent=1 // pred_check_branch
      %19 = sbr.rel (0) target = $region9
    $region8: #{tpu_custom_call.1} parent=1 // pred_region
      %21 = dma.done [#allocation3], 256
    $region9: #{tpu_custom_call.1} parent=1 // pred_fallthru
      _
    %v22 = vld [vmem:[#allocation2] sm:$0xff]
    %v23 = vld [vmem:[#allocation2 + $0x8] sm:$0xff]
    %v24 = vmax.f32 %v22, 1e-06
    %v25 = vmax.f32 %v23, 1e-06
    %v26 = vadd.f32 %v24, %v25
    %27 = vadd.xlane.f32.xlu0 %v26
    %v28 = vpop.xlane.xlu0 %27
    %v29 = vmul.f32 %v28, 0.00390625
    %vm30 = vcmask 7168
    %31 = vst.msk [vmem:[%s1] sm:$0xff] %vm30, %v29
    // Predicated region
    $region10: #{tpu_custom_call.1} parent=1 // pred_check
      _
    $region11: #{tpu_custom_call.1} parent=1 // pred_check_branch
      %33 = sbr.rel (0) target = $region13
    $region12: #{tpu_custom_call.1} parent=1 // pred_region
      _
    $region13: #{tpu_custom_call.1} parent=1 // pred_fallthru
      _
    // Predicated region
    $region14: #{tpu_custom_call.1} parent=1 // pred_check
      _
    $region15: #{tpu_custom_call.1} parent=1 // pred_check_branch
      %35 = sbr.rel (0) target = $region17
    $region16: #{tpu_custom_call.1} parent=1 // pred_region
      _
    $region17: #{tpu_custom_call.1} parent=1 // pred_fallthru
      _
    %36 = vsyncpa [#allocation3], 1

</llo_original>
